<compile_context>
chip_gen: v7x
topology: tpu7x:2x2x1
jax: 0.10.0
libtpu: 0.0.40
codegen_flags: <defaults>
</compile_context>

<pallas_src>
import functools

import jax
import jax.numpy as jnp
from jax import lax
from jax.experimental import pallas as pl
from jax.experimental.pallas import tpu as pltpu


def _gcn_kernel(adj_ref, x_ref, w_ref, b_ref, o_ref, *, apply_relu):
    # adj_ref: (bt, N, N) int8, x_ref: (bt*N, Fp_in) f32,
    # w_ref:   (Fp_in, Fp_out) bf16, b_ref: (1, Fp_out) f32,
    # o_ref:   (bt*N, Fp_out)
    bt, n, _ = adj_ref.shape

    parts = []
    for g in range(bt):                                   # static unroll over tile
        adj_g = adj_ref[g]                                 # (N, N) int8
        # deg(A + I) = rowsum(A) + 1; accumulate in f32 without an explicit
        # full-block f32 adjacency copy.  deg >= 1, so rsqrt needs no guard.
        deg = jnp.sum(adj_g, axis=-1, dtype=jnp.float32, keepdims=True) + 1.0
        dinv = lax.rsqrt(deg)                              # (N, 1) f32

        x_g = x_ref[pl.ds(g * n, n), :].astype(jnp.float32)  # (N, Fp_in)
        xs = x_g * dinv                                    # D^-1/2 x
        # Aggregate with the *raw* adjacency on the MXU (bf16 operands,
        # f32 accumulation), add the self-loop term, post-scale rows.
        agg = jnp.dot(adj_g.astype(jnp.bfloat16), xs.astype(jnp.bfloat16),
                      preferred_element_type=jnp.float32)
        agg = (agg + xs) * dinv                            # (N, Fp_in) f32
        parts.append(agg.astype(jnp.bfloat16))

    agg_all = parts[0] if bt == 1 else jnp.concatenate(parts, axis=0)

    # TODO(synk): nn.Dropout omitted (p=0.0 / eval mode => identity).

    # Linear layer fused across the batch tile: one lane-dense 2-D matmul.
    out = jnp.dot(agg_all, w_ref[...], preferred_element_type=jnp.float32)
    out = out + b_ref[...]                                 # (bt*N, Fp_out) f32
    if apply_relu:
        out = jnp.maximum(out, 0.0)

    o_ref[...] = out.astype(o_ref.dtype)


def _round_up(v, m):
    return ((v + m - 1) // m) * m


def _vmem_capacity_bytes():
    """Per-core VMEM capacity; conservative 64 MiB (v7x) fallback."""
    try:
        return int(pltpu.get_tpu_info().vmem_capacity_bytes)
    except Exception:
        return 64 * 1024 * 1024


def _pick_batch_tile(batch, n, fp_in, fp_out, budget_bytes):
    """Largest divisor of `batch` that keeps >= 2 grid steps while the per-step
    live set (blocks, double buffers, and in-kernel f32/bf16 temps) fits the
    budget.  Tiles must keep the flattened row block sublane-aligned."""
    if batch <= 1:
        return 1
    per_b = (n * n * 4            # adj: int8 block x2 (double buffer) + bf16 upcast
             + n * fp_in * 20     # x block x2 (f32) + xs f32 + agg f32 + bf16 temps
             + n * fp_out * 12)   # out block x2 (f32) + pre-store f32
    cap = max(1, budget_bytes // max(per_b, 1))
    target = int(min(cap, max(1, batch // 2)))    # keep >= 2 steps (megacore)
    for bt in range(target, 0, -1):
        if batch % bt == 0 and (bt * n) % 8 == 0:
            return bt
    return batch   # single full-extent block: always layout-legal


def gcn_layer(x, adj, weight, bias, *, apply_relu=True, batch_tile=None,
              adj_hbm_dtype=jnp.int8):
    """x: (B, N, Fin), adj: (B, N, N), weight: (Fout, Fin) torch layout, bias: (Fout,).

    adj_hbm_dtype=int8 is exact only for 0/1 adjacencies; pass jnp.bfloat16 or
    jnp.float32 for weighted graphs.
    """
    B, N, Fin = x.shape
    Fout = weight.shape[0]
    Fp_in = _round_up(Fin, 128)
    Fp_out = _round_up(Fout, 128)

    vmem_cap = _vmem_capacity_bytes()
    vmem_limit = int(0.75 * vmem_cap)              # headroom for scratch/overshoot
    weight_bytes = 2 * (Fp_in * Fp_out * 2 + Fp_out * 4)
    tile_budget = max(1 << 20, int(0.45 * vmem_cap) - weight_bytes)

    bt = batch_tile if batch_tile is not None else _pick_batch_tile(
        B, N, Fp_in, Fp_out, tile_budget)
    assert B % bt == 0, (B, bt)

    # Narrow adjacency in HBM; lane-dense zero-padded features/weights/bias;
    # batch flatten done here (free XLA metadata), not in-kernel.
    adj_q = adj.astype(adj_hbm_dtype)
    x2 = jnp.pad(x, ((0, 0), (0, 0), (0, Fp_in - Fin))).reshape(B * N, Fp_in)
    w_p = jnp.pad(jnp.transpose(weight),
                  ((0, Fp_in - Fin), (0, Fp_out - Fout))).astype(jnp.bfloat16)
    b_p = jnp.pad(bias, (0, Fp_out - Fout)).reshape(1, Fp_out).astype(jnp.float32)

    kernel = functools.partial(_gcn_kernel, apply_relu=apply_relu)

    out2 = pl.pallas_call(
        kernel,
        out_shape=jax.ShapeDtypeStruct((B * N, Fp_out), x.dtype),
        grid_spec=pltpu.PrefetchScalarGridSpec(
            num_scalar_prefetch=0,
            grid=(B // bt,),
            in_specs=[
                pl.BlockSpec((bt, N, N), lambda b: (b, 0, 0)),       # adj (int8)
                pl.BlockSpec((bt * N, Fp_in), lambda b: (b, 0)),     # x (flattened)
                pl.BlockSpec((Fp_in, Fp_out), lambda b: (0, 0)),     # W^T (bf16)
                pl.BlockSpec((1, Fp_out), lambda b: (0, 0)),         # bias
            ],
            out_specs=pl.BlockSpec((bt * N, Fp_out), lambda b: (b, 0)),
        ),
        compiler_params=pltpu.CompilerParams(
            dimension_semantics=("parallel",),
            vmem_limit_bytes=vmem_limit,
        ),
    )(adj_q, x2, w_p, b_p)

    return out2.reshape(B, N, Fp_out)[:, :, :Fout]


def _reference(x, adj, weight, bias, apply_relu=True):
    """Pure-JAX f32 reference mirroring the PyTorch forward."""
    B, N, _ = x.shape
    eye = jnp.eye(N, dtype=x.dtype)
    adj_hat = adj + eye[None]
    deg = jnp.sum(adj_hat, axis=2)
    dinv = jnp.power(deg, -0.5)
    dinv = jnp.where(jnp.isinf(dinv), 0.0, dinv)
    norm_adj = dinv[:, :, None] * adj_hat * dinv[:, None, :]
    agg = jnp.einsum("bij,bjf->bif", norm_adj, x)
    out = jnp.einsum("bif,of->bio", agg, weight) + bias
    return jnp.maximum(out, 0.0) if apply_relu else out


if __name__ == "__main__":
    B, N, F_IN, F_OUT = 2, 16, 32, 32

    key = jax.random.PRNGKey(0)
    kx, ka, kw, kb = jax.random.split(key, 4)

    x = jax.random.normal(kx, (B, N, F_IN), dtype=jnp.float32)
    # Symmetric 0/1 adjacency (exactly representable in int8).
    a = (jax.random.uniform(ka, (B, N, N)) > 0.7).astype(jnp.float32)
    adj = jnp.maximum(a, jnp.transpose(a, (0, 2, 1)))

    # Deterministic nn.Linear-like parameters: weight (F_OUT, F_IN), bias (F_OUT,)
    bound = 1.0 / (F_IN ** 0.5)
    weight = jax.random.uniform(kw, (F_OUT, F_IN), minval=-bound, maxval=bound,
                                dtype=jnp.float32)
    bias = jax.random.uniform(kb, (F_OUT,), minval=-bound, maxval=bound,
                              dtype=jnp.float32)

    for relu in (True, False):
        out = jax.block_until_ready(gcn_layer(x, adj, weight, bias, apply_relu=relu))
        ref = _reference(x, adj, weight, bias, apply_relu=relu)
        assert out.shape == (B, N, F_OUT)
        # bf16 MXU operands -> slightly looser tolerance than pure f32.
        assert jnp.allclose(out, ref, atol=5e-2, rtol=5e-2), \
            float(jnp.max(jnp.abs(out - ref)))

    print("KERNEL_OK")
</pallas_src>

<mosaic_0001>
module attributes {stable_mosaic.version = 11 : i64} {
  func.func @_gcn_kernel(%arg0: i32, %arg1: memref<1x16x16xi8, #tpu.memory_space<vmem>>, %arg2: memref<16x128xf32, #tpu.memory_space<vmem>>, %arg3: memref<128x128xbf16, #tpu.memory_space<vmem>>, %arg4: memref<1x128xf32, #tpu.memory_space<vmem>>, %arg5: memref<16x128xf32, #tpu.memory_space<vmem>>) attributes {dimension_semantics = [#tpu.dimension_semantics<parallel>], iteration_bounds = array<i64: 2>, scalar_prefetch = 0 : i64, scratch_operands = 0 : i64, tpu.core_type = #tpu.core_type<tc>, window_params = [{transform_indices = @transform_0, window_bounds = array<i64: 1, 16, 16>}, {transform_indices = @transform_1, window_bounds = array<i64: 16, 128>}, {pipeline_mode = #tpu.pipeline_mode<synchronous>, transform_indices = @transform_2, window_bounds = array<i64: 128, 128>}, {pipeline_mode = #tpu.pipeline_mode<synchronous>, transform_indices = @transform_3, window_bounds = array<i64: 1, 128>}, {transform_indices = @transform_4, window_bounds = array<i64: 16, 128>}]} {
    %c0 = arith.constant 0 : index
    %c0_0 = arith.constant 0 : index
    %c0_1 = arith.constant 0 : index
    %0 = vector.load %arg1[%c0, %c0_0, %c0_1] : memref<1x16x16xi8, #tpu.memory_space<vmem>>, vector<1x16x16xi8>
    %1 = vector.shape_cast %0 : vector<1x16x16xi8> to vector<16x16xi8>
    %2 = arith.sitofp %1 : vector<16x16xi8> to vector<16x16xf32>
    %cst = arith.constant dense<0.000000e+00> : vector<16xf32>
    %3 = vector.multi_reduction <add>, %2, %cst [1] : vector<16x16xf32> to vector<16xf32>
    %4 = vector.shape_cast %3 : vector<16xf32> to vector<16x1xf32>
    %cst_2 = arith.constant 1.000000e+00 : f32
    %5 = vector.broadcast %cst_2 : f32 to vector<16x1xf32>
    %6 = arith.addf %4, %5 : vector<16x1xf32>
    %7 = math.rsqrt %6 : vector<16x1xf32>
    %c0_3 = arith.constant 0 : index
    %c0_4 = arith.constant 0 : index
    %8 = vector.load %arg2[%c0_3, %c0_4] : memref<16x128xf32, #tpu.memory_space<vmem>>, vector<16x128xf32>
    %9 = vector.broadcast %7 : vector<16x1xf32> to vector<16x128xf32>
    %10 = arith.mulf %8, %9 : vector<16x128xf32>
    %11 = arith.sitofp %1 : vector<16x16xi8> to vector<16x16xbf16>
    %12 = arith.truncf %10 : vector<16x128xf32> to vector<16x128xbf16>
    %cst_5 = arith.constant dense<0.000000e+00> : vector<16x128xf32>
    %13 = tpu.matmul %11, %12, %cst_5 {dimension_numbers = #tpu.dot_dimension_numbers<[1], [0], [0], [1], [0, 0, 1, 1], [], []>} : vector<16x16xbf16>, vector<16x128xbf16>, vector<16x128xf32> -> vector<16x128xf32>
    %14 = arith.addf %13, %10 : vector<16x128xf32>
    %15 = vector.broadcast %7 : vector<16x1xf32> to vector<16x128xf32>
    %16 = arith.mulf %14, %15 : vector<16x128xf32>
    %17 = arith.truncf %16 : vector<16x128xf32> to vector<16x128xbf16>
    %c0_6 = arith.constant 0 : index
    %c0_7 = arith.constant 0 : index
    %18 = vector.load %arg3[%c0_6, %c0_7] : memref<128x128xbf16, #tpu.memory_space<vmem>>, vector<128x128xbf16>
    %cst_8 = arith.constant dense<0.000000e+00> : vector<16x128xf32>
    %19 = tpu.matmul %17, %18, %cst_8 {dimension_numbers = #tpu.dot_dimension_numbers<[1], [0], [0], [1], [0, 0, 1, 1], [], []>} : vector<16x128xbf16>, vector<128x128xbf16>, vector<16x128xf32> -> vector<16x128xf32>
    %c0_9 = arith.constant 0 : index
    %c0_10 = arith.constant 0 : index
    %20 = vector.load %arg4[%c0_9, %c0_10] : memref<1x128xf32, #tpu.memory_space<vmem>>, vector<1x128xf32>
    %21 = vector.broadcast %20 : vector<1x128xf32> to vector<16x128xf32>
    %22 = arith.addf %19, %21 : vector<16x128xf32>
    %cst_11 = arith.constant 0.000000e+00 : f32
    %23 = vector.broadcast %cst_11 : f32 to vector<16x128xf32>
    %24 = arith.maximumf %22, %23 : vector<16x128xf32>
    %c0_12 = arith.constant 0 : index
    %c0_13 = arith.constant 0 : index
    %25 = vector.load %arg5[%c0_12, %c0_13] : memref<16x128xf32, #tpu.memory_space<vmem>>, vector<16x128xf32>
    tpu.vector_store %arg5[%c0_12, %c0_13], %24 {strides = array<i32>} : memref<16x128xf32, #tpu.memory_space<vmem>>, vector<16x128xf32>,
    return
  }
  func.func @transform_0(%arg0: i32) -> (i32, i32, i32) {
    %c0_i32 = arith.constant 0 : i32
    %c0_i32_0 = arith.constant 0 : i32
    %c0_i32_1 = arith.constant 0 : i32
    return %arg0, %c0_i32, %c0_i32_0 : i32, i32, i32
  }
  func.func @transform_1(%arg0: i32) -> (i32, i32) {
    %c0_i32 = arith.constant 0 : i32
    %c0_i32_0 = arith.constant 0 : i32
    return %arg0, %c0_i32 : i32, i32
  }
  func.func @transform_2(%arg0: i32) -> (i32, i32) {
    %c0_i32 = arith.constant 0 : i32
    %c0_i32_0 = arith.constant 0 : i32
    %c0_i32_1 = arith.constant 0 : i32
    return %c0_i32, %c0_i32_0 : i32, i32
  }
  func.func @transform_3(%arg0: i32) -> (i32, i32) {
    %c0_i32 = arith.constant 0 : i32
    %c0_i32_0 = arith.constant 0 : i32
    %c0_i32_1 = arith.constant 0 : i32
    return %c0_i32, %c0_i32_0 : i32, i32
  }
  func.func @transform_4(%arg0: i32) -> (i32, i32) {
    %c0_i32 = arith.constant 0 : i32
    %c0_i32_0 = arith.constant 0 : i32
    return %arg0, %c0_i32 : i32, i32
  }
}

</mosaic_0001>

<llo_original>
// kernel: tpu_custom_call.1
$region0: #{tpu_custom_call.1}
  #allocation0 [shape = 'u32[]', space=smem, size = 0x4, offset = 0x4, fixed_abs, tag = 'smem constant byte address 0x4 - core index']
  #allocation1 [shape = 'u32[144,128]{1,0:T(1,128)}', space=vmem, size = 0x12000, scoped, tag = 'internal scratch']
  %s0 = inlined_call_operand.hbm [shape: s8[2,16,16], index: 0, kind: input, shape index: {}]
  %s1 = inlined_call_operand.hbm [shape: f32[32,128], index: 1, kind: input, shape index: {}]
  %s2 = inlined_call_operand.hbm [shape: bf16[128,128], index: 2, kind: input, shape index: {}]
  %s3 = inlined_call_operand.vmem [shape: f32[1,128], index: 3, kind: input, shape index: {}]
  %s4 = inlined_call_operand.hbm [shape: f32[32,128], index: 4, kind: output, shape index: {}]
  %s5 = sld [smem:[#allocation0]]
  $region61: #{tpu_custom_call.1} parent=0
    _
  %s7 = ssub.s32 1, %s5
  %s8 = scalar_select 0, %s7, %s5
  $region1: #{tpu_custom_call.1} parent=0
    #allocation2 [shape = 'u8[4096]{0}', space=vmem, size = 0x1000, scoped, tag = 'input window, operand 0']
    #allocation3 [shape = 's32[2]{0}', space=sflag, size = 0x8, scoped, tag = 'scoped memory for tpu_custom_call.1']
    #allocation4 [shape = 's32[2]{0}', space=sflag, size = 0x8, scoped, tag = 'scoped memory for tpu_custom_call.1']
    #allocation5 [shape = 'u8[16384]{0}', space=vmem, size = 0x4000, scoped, tag = 'input window, operand 1']
    #allocation6 [shape = 's32[2]{0}', space=sflag, size = 0x8, scoped, tag = 'scoped memory for tpu_custom_call.1']
    #allocation7 [shape = 'u8[32768]{0}', space=vmem, size = 0x8000, scoped, tag = 'input window, operand 2, single buffered']
    #allocation8 [shape = 'u8[16384]{0}', space=vmem, size = 0x4000, scoped, tag = 'output window, operand 0']
    %9 = vsyncpa [#allocation3], 0
    %s10 = scalar_lea.sflag [#allocation3], 1
    %11 = vsyncpa %s10, 0
    %12 = vsyncpa [#allocation6], 0
    %s13 = scalar_lea.sflag [#allocation6], 1
    %14 = vsyncpa %s13, 0
    %15 = vsyncpa [#allocation4], 0
    %s16 = scalar_lea.sflag [#allocation4], 1
    %17 = vsyncpa %s16, 0
    loop: start=0, step=1, limit=4
    $region2: #{tpu_custom_call.1} parent=1 // loop_pre_header
      _
    $region3: #{tpu_custom_call.1} parent=1 // loop_header
      %s19 = sphi 0, %s23
      %p20 = scmp.ge.s32.totalorder %s19, 4
      %s29 = sphi 0, %s31
      %s32 = sphi 0, %s29
      %s33 = sphi 0, %s32
      %s49 = sphi 0, %s33
      %s55 = sphi 0, %s57
      %s58 = sphi 0, %s55
      %s59 = sphi 0, %s58
      %s75 = sphi 0, %s59
      %s79 = sphi 0, %s79
      %s81 = sphi 0, %s79
      %s82 = sphi 0, %s81
      %s96 = sphi 0, %s82
      %s100 = sphi 0, %s100
      %s102 = sphi 0, %s100
      %s103 = sphi 0, %s102
      %s117 = sphi 0, %s103
      %s123 = sphi 0, %s125
      %s126 = sphi 0, %s123
      %s127 = sphi 0, %s126
      %s143 = sphi 0, %s127
    $region4: #{tpu_custom_call.1} parent=1 // loop_header_branch
      %22 = sbr.rel (%p20) target = $region8
    $region5: #{tpu_custom_call.1} parent=1 // loop_body
      %s24 = ssub.s32 %s19, 1
      %s25 = ssub.s32 %s19, 2
      %s26 = sadd.s32 %s19, 1
      %s27 = ssub.s32 %s19, %s26
      %p28 = scmp.eq.s32.totalorder %s27, 0
      %s30 = sadd.s32 %s29, 1
      %s31 = scalar_select %p28, %s29, %s30
      %p34 = pneg %p28
      %p35 = scmp.eq.s32.totalorder %s19, 1
      %p36 = por %p34, %p35
      %p37 = scmp.ne.s32.totalorder %s29, %s32
      %p38 = scmp.eq.s32.totalorder %s19, 0
      %p39 = por %p37, %p38
      %p40 = scmp.ne.s32.totalorder %s29, %s32
      %p41 = scmp.eq.s32.totalorder %s24, 1
      %p42 = por %p40, %p41
      %p43 = scmp.ne.s32.totalorder %s32, %s33
      %p44 = scmp.eq.s32.totalorder %s24, 0
      %p45 = por %p43, %p44
      %p46 = scmp.ne.s32.totalorder %s32, %s33
      %p47 = scmp.eq.s32.totalorder %s25, 1
      %p48 = por %p46, %p47
      %p50 = scmp.ne.s32.totalorder %s33, %s49
      %p51 = scmp.eq.s32.totalorder %s25, 0
      %p52 = por %p50, %p51
      %s53 = ssub.s32 %s19, %s26
      %p54 = scmp.eq.s32.totalorder %s53, 0
      %s56 = sadd.s32 %s55, 1
      %s57 = scalar_select %p54, %s55, %s56
      %p60 = pneg %p54
      %p61 = scmp.eq.s32.totalorder %s19, 1
      %p62 = por %p60, %p61
      %p63 = scmp.ne.s32.totalorder %s55, %s58
      %p64 = scmp.eq.s32.totalorder %s19, 0
      %p65 = por %p63, %p64
      %p66 = scmp.ne.s32.totalorder %s55, %s58
      %p67 = scmp.eq.s32.totalorder %s24, 1
      %p68 = por %p66, %p67
      %p69 = scmp.ne.s32.totalorder %s58, %s59
      %p70 = scmp.eq.s32.totalorder %s24, 0
      %p71 = por %p69, %p70
      %p72 = scmp.ne.s32.totalorder %s58, %s59
      %p73 = scmp.eq.s32.totalorder %s25, 1
      %p74 = por %p72, %p73
      %p76 = scmp.ne.s32.totalorder %s59, %s75
      %p77 = scmp.eq.s32.totalorder %s25, 0
      %p78 = por %p76, %p77
      %s80 = sadd.s32 %s79, 1
      %p83 = scmp.eq.s32.totalorder %s19, 1
      %p84 = scmp.ne.s32.totalorder %s79, %s81
      %p85 = scmp.eq.s32.totalorder %s19, 0
      %p86 = por %p84, %p85
      %p87 = scmp.ne.s32.totalorder %s79, %s81
      %p88 = scmp.eq.s32.totalorder %s24, 1
      %p89 = por %p87, %p88
      %p90 = scmp.ne.s32.totalorder %s81, %s82
      %p91 = scmp.eq.s32.totalorder %s24, 0
      %p92 = por %p90, %p91
      %p93 = scmp.ne.s32.totalorder %s81, %s82
      %p94 = scmp.eq.s32.totalorder %s25, 1
      %p95 = por %p93, %p94
      %p97 = scmp.ne.s32.totalorder %s82, %s96
      %p98 = scmp.eq.s32.totalorder %s25, 0
      %p99 = por %p97, %p98
      %s101 = sadd.s32 %s100, 1
      %p104 = scmp.eq.s32.totalorder %s19, 1
      %p105 = scmp.ne.s32.totalorder %s100, %s102
      %p106 = scmp.eq.s32.totalorder %s19, 0
      %p107 = por %p105, %p106
      %p108 = scmp.ne.s32.totalorder %s100, %s102
      %p109 = scmp.eq.s32.totalorder %s24, 1
      %p110 = por %p108, %p109
      %p111 = scmp.ne.s32.totalorder %s102, %s103
      %p112 = scmp.eq.s32.totalorder %s24, 0
      %p113 = por %p111, %p112
      %p114 = scmp.ne.s32.totalorder %s102, %s103
      %p115 = scmp.eq.s32.totalorder %s25, 1
      %p116 = por %p114, %p115
      %p118 = scmp.ne.s32.totalorder %s103, %s117
      %p119 = scmp.eq.s32.totalorder %s25, 0
      %p120 = por %p118, %p119
      %s121 = ssub.s32 %s19, %s26
      %p122 = scmp.eq.s32.totalorder %s121, 0
      %s124 = sadd.s32 %s123, 1
      %s125 = scalar_select %p122, %s123, %s124
      %p128 = pneg %p122
      %p129 = scmp.eq.s32.totalorder %s19, 1
      %p130 = por %p128, %p129
      %p131 = scmp.ne.s32.totalorder %s123, %s126
      %p132 = scmp.eq.s32.totalorder %s19, 0
      %p133 = por %p131, %p132
      %p134 = scmp.ne.s32.totalorder %s123, %s126
      %p135 = scmp.eq.s32.totalorder %s24, 1
      %p136 = por %p134, %p135
      %p137 = scmp.ne.s32.totalorder %s126, %s127
      %p138 = scmp.eq.s32.totalorder %s24, 0
      %p139 = por %p137, %p138
      %p140 = scmp.ne.s32.totalorder %s126, %s127
      %p141 = scmp.eq.s32.totalorder %s25, 1
      %p142 = por %p140, %p141
      %p144 = scmp.ne.s32.totalorder %s127, %s143
      %p145 = scmp.eq.s32.totalorder %s25, 0
      %p146 = por %p144, %p145
      %p147 = scmp.le.s32.totalorder 1, %s19
      %p148 = scmp.lt.s32.totalorder %s19, 3
      %p149 = pnand %p147, %p148
      %p150 = pneg %p149
      // Predicated region
      $region9: #{tpu_custom_call.1} parent=5 // pred_check
        _
      $region10: #{tpu_custom_call.1} parent=5 // pred_check_branch
        %152 = sbr.rel (%p149) target = $region12
      $region11: #{tpu_custom_call.1} parent=5 // pred_region
        %s153 = ssub.s32 %s19, 1
        // Predicated region
        $region13: #{tpu_custom_call.1} parent=11 // pred_check
          %p154 = pneg %p92
        $region14: #{tpu_custom_call.1} parent=11 // pred_check_branch
          %156 = sbr.rel (%p154) target = $region16
        $region15: #{tpu_custom_call.1} parent=11 // pred_region
          %s158 = ssub.s32 1024, 1024
          %159 = vsyncadd [#allocation6], %s158
          %s160 = sshll.u32 [#allocation7], 4
          %s161 = int_to_ptr.vmem [resolvable:$true] %s160
          %166 = dma.hbm_to_vmem [thread:$0]  %s2, 1024, %s161, [#allocation6], 64, 64, 4
        $region16: #{tpu_custom_call.1} parent=11 // pred_fallthru
          _
        // Predicated region
        $region17: #{tpu_custom_call.1} parent=11 // pred_check
          %p167 = pneg %p113
        $region18: #{tpu_custom_call.1} parent=11 // pred_check_branch
          %169 = sbr.rel (%p167) target = $region20
        $region19: #{tpu_custom_call.1} parent=11 // pred_region
          _
        $region20: #{tpu_custom_call.1} parent=11 // pred_fallthru
          _
      $region12: #{tpu_custom_call.1} parent=5 // pred_fallthru
        _
      %p170 = scmp.lt.s32.totalorder %s19, 2
      // Predicated region
      $region21: #{tpu_custom_call.1} parent=5 // pred_check
        %p171 = pneg %p170
      $region22: #{tpu_custom_call.1} parent=5 // pred_check_branch
        %173 = sbr.rel (%p171) target = $region24
      $region23: #{tpu_custom_call.1} parent=5 // pred_region
        // Predicated region
        $region25: #{tpu_custom_call.1} parent=23 // pred_check
          %p174 = pneg %p39
        $region26: #{tpu_custom_call.1} parent=23 // pred_check_branch
          %176 = sbr.rel (%p174) target = $region28
        $region27: #{tpu_custom_call.1} parent=23 // pred_region
          %s177 = sand.u32 %s29, 1
          %s178 = scalar_lea.sflag [#allocation3], %s177
          %s179 = sand.u32 %s29, 1
          %s180 = smul.addr %s179, 4
          %s181 = scalar_lea.vmem [#allocation2], %s180
          %s183 = ssub.s32 64, 64
          %184 = vsyncadd %s178, %s183
          %s185 = smul.addr %s19, 2
          %s186 = smul.addr %s185, 32
          %s187 = scalar_lea.hbm %s0, %s186
          %s188 = sshll.u32 %s181, 4
          %s189 = int_to_ptr.vmem [resolvable:$true] %s188
          %194 = dma.hbm_to_vmem [thread:$0]  %s187, 64, %s189, %s178, 32, 32, 2
        $region28: #{tpu_custom_call.1} parent=23 // pred_fallthru
          _
        // Predicated region
        $region29: #{tpu_custom_call.1} parent=23 // pred_check
          %p195 = pneg %p65
        $region30: #{tpu_custom_call.1} parent=23 // pred_check_branch
          %197 = sbr.rel (%p195) target = $region32
        $region31: #{tpu_custom_call.1} parent=23 // pred_region
          %s198 = sand.u32 %s19, 1
          %s199 = scalar_lea.sflag [#allocation6], %s198
          %s200 = sand.u32 %s55, 1
          %s201 = smul.addr %s200, 16
          %s202 = scalar_lea.vmem [#allocation5], %s201
          %s203 = smul.u32 2, %s19
          %s205 = ssub.s32 256, 256
          %206 = vsyncadd %s199, %s205
          %s207 = smul.addr %s203, 128
          %s208 = scalar_lea.hbm %s1, %s207
          %s209 = sshll.u32 %s202, 4
          %s210 = int_to_ptr.vmem [resolvable:$true] %s209
          %215 = dma.hbm_to_vmem [thread:$0]  %s208, 256, %s210, %s199, 128, 128, 8
        $region32: #{tpu_custom_call.1} parent=23 // pred_fallthru
          _
      $region24: #{tpu_custom_call.1} parent=5 // pred_fallthru
        _
      %p216 = scmp.le.s32.totalorder 1, %s19
      %p217 = scmp.lt.s32.totalorder %s19, 3
      %p218 = pnand %p216, %p217
      %p219 = pneg %p218
      // Predicated region
      $region33: #{tpu_custom_call.1} parent=5 // pred_check
        _
      $region34: #{tpu_custom_call.1} parent=5 // pred_check_branch
        %221 = sbr.rel (%p218) target = $region36
      $region35: #{tpu_custom_call.1} parent=5 // pred_region
        %s222 = ssub.s32 %s19, 1
        %s223 = sand.u32 %s32, 1
        %s224 = scalar_lea.sflag [#allocation3], %s223
        %s225 = sand.u32 %s32, 1
        %s226 = smul.addr %s225, 4
        %s227 = scalar_lea.vmem [#allocation2], %s226
        // Predicated region
        $region37: #{tpu_custom_call.1} parent=35 // pred_check
          %p228 = pneg %p45
        $region38: #{tpu_custom_call.1} parent=35 // pred_check_branch
          %230 = sbr.rel (%p228) target = $region40
        $region39: #{tpu_custom_call.1} parent=35 // pred_region
          %231 = dma.done %s224, 64
        $region40: #{tpu_custom_call.1} parent=35 // pred_fallthru
          _
        %s232 = sand.u32 %s24, 1
        %s233 = scalar_lea.sflag [#allocation6], %s232
        %s234 = sand.u32 %s58, 1
        %s235 = smul.addr %s234, 16
        %s236 = scalar_lea.vmem [#allocation5], %s235
        // Predicated region
        $region41: #{tpu_custom_call.1} parent=35 // pred_check
          %p237 = pneg %p71
        $region42: #{tpu_custom_call.1} parent=35 // pred_check_branch
          %239 = sbr.rel (%p237) target = $region44
        $region43: #{tpu_custom_call.1} parent=35 // pred_region
          %240 = dma.done %s233, 256
        $region44: #{tpu_custom_call.1} parent=35 // pred_fallthru
          _
        // Predicated region
        $region45: #{tpu_custom_call.1} parent=35 // pred_check
          %p241 = pneg %p92
        $region46: #{tpu_custom_call.1} parent=35 // pred_check_branch
          %243 = sbr.rel (%p241) target = $region48
        $region47: #{tpu_custom_call.1} parent=35 // pred_region
          %244 = dma.done [#allocation6], 1024
        $region48: #{tpu_custom_call.1} parent=35 // pred_fallthru
          _
        %s245 = sand.u32 %s32, 1
        %s246 = scalar_lea.sflag [#allocation3], %s245
        %s247 = sand.u32 %s32, 1
        %s248 = smul.addr %s247, 4
        %s249 = scalar_lea.vmem [#allocation2], %s248
        %p250 = pneg %p45
        %p251 = pneg %p42
        %s252 = sand.u32 %s24, 1
        %s253 = scalar_lea.sflag [#allocation6], %s252
        %s254 = sand.u32 %s58, 1
        %s255 = smul.addr %s254, 16
        %s256 = scalar_lea.vmem [#allocation5], %s255
        %p257 = pneg %p71
        %p258 = pneg %p68
        %p259 = pneg %p92
        %p260 = pneg %p89
        %p261 = pneg %p113
        %p262 = pneg %p110
        %p263 = pneg %p139
        %p264 = pneg %p136
        %s265 = sand.u32 %s126, 1
        %s266 = scalar_lea.sflag [#allocation4], %s265
        %s267 = sand.u32 %s126, 1
        %s268 = smul.addr %s267, 16
        %s269 = scalar_lea.vmem [#allocation8], %s268
        %s270 = smul.u32 2, %s24
        %s271 = smul.u32 2, %s24
        %v273 = vld [vmem:[%s227] sm:$0x3]
        %v274 = vld [vmem:[%s227 + $0x2] sm:$0x3]
        %v275 = vunpack.c.0.s8 %v273
        %v276 = vunpack.c.0.s8 %v274
        %v277 = vcvt.s32.f32 %v275
        %v278 = vcvt.s32.f32 %v276
        %vm279 = vcmask 130048
        %v280 = vsel %vm279, %v277, 0.0
        %281 = vadd.xlane.f32.xlu0 %v280
        %v282 = vpop.xlane.xlu0 %281
        %v283 = vsel %vm279, %v278, 0.0
        %284 = vadd.xlane.f32.xlu0 %v283
        %v285 = vpop.xlane.xlu0 %284
        %v286 = vadd.f32 %v282, 1.0
        %v287 = vadd.f32 %v285, 1.0
        %v288 = vrsqrt.pop %v286
        %v289 = vrsqrt.pop %v287
        %v290 = vld [vmem:[%s236] sm:$0xff]
        %v291 = vld [vmem:[%s236 + $0x8] sm:$0xff]
        %v292 = vmul.f32 %v290, %v288
        %v293 = vmul.f32 %v291, %v289
        %v294 = vunpack.c.l.s8.bf16 %v273
        %v295 = vunpack.c.l.s8.bf16 %v274
        %v296 = vpack.c.bf16 %v293, %v292
        %v299 = vunpack.c.l.b16 %v294
        %v300 = vunpack.c.l.b16 %v295
        %v301 = vpack.c.b16 %v300, %v299
        %v303 = vsel %vm279, %v301, 0
        %305 = vmatprep.subr.bf16.mxu0 0
        %306 = vmatpush1.bf16.msra.mxu0 %v296
        %307 = vmatprep.subr.bf16.mxu0 0
        %308 = vmatpush1.bf16.msra.mxu0 0
        %309 = vmatprep.subr.bf16.mxu0 0
        %310 = vmatpush1.bf16.msra.mxu0 0
        %311 = vmatprep.subr.bf16.mxu0 0
        %312 = vmatpush1.bf16.msra.mxu0 0
        %313 = vmatprep.subr.bf16.mxu0 0
        %314 = vmatpush1.bf16.msra.mxu0 0
        %315 = vmatprep.subr.bf16.mxu0 0
        %316 = vmatpush1.bf16.msra.mxu0 0
        %317 = vmatprep.subr.bf16.mxu0 0
        %318 = vmatpush1.bf16.msra.mxu0 0
        %319 = vmatprep.subr.bf16.mxu0 0
        %320 = vmatpush1.bf16.msra.mxu0 0
        %321 = vmatprep.subr.bf16.mxu0 0
        %322 = vmatpush1.bf16.msra.mxu0 0
        %323 = vmatprep.subr.bf16.mxu0 0
        %324 = vmatpush1.bf16.msra.mxu0 0
        %325 = vmatprep.subr.bf16.mxu0 0
        %326 = vmatpush1.bf16.msra.mxu0 0
        %327 = vmatprep.subr.bf16.mxu0 0
        %328 = vmatpush1.bf16.msra.mxu0 0
        %329 = vmatprep.subr.bf16.mxu0 0
        %330 = vmatpush1.bf16.msra.mxu0 0
        %331 = vmatprep.subr.bf16.mxu0 0
        %332 = vmatpush1.bf16.msra.mxu0 0
        %333 = vmatprep.subr.bf16.mxu0 0
        %334 = vmatpush1.bf16.msra.mxu0 0
        %335 = vmatprep.subr.bf16.mxu0 0
        %336 = vmatpush1.bf16.msra.mxu0 0
        %337 = vmatprep.mubr.bf16.mxu0 0
        %338 = vmatmul.mubr.bf16.gmra.mrb[0].mxu0 %v303
        %v339 = vpop.f32.mrb[0].mxu0
        %v340 = vadd.f32 %v292, %v339
        %v341 = vpop.f32.mrb[0].mxu0
        %v342 = vpop.f32.mrb[0].mxu0
        %v343 = vadd.f32 %v293, %v342
        %v344 = vpop.f32.mrb[0].mxu0
        %345 = vdwg.mxu0
        %v346 = vmul.f32 %v340, %v288
        %v347 = vmul.f32 %v343, %v289
        %v348 = vpack.c.bf16 %v347, %v346
        %v349 = vld [vmem:[#allocation7] sm:$0xf]
        %v350 = vld [vmem:[#allocation7 + $0x4] sm:$0xf]
        %v351 = vld [vmem:[#allocation7 + $0x8] sm:$0xf]
        %v352 = vld [vmem:[#allocation7 + $0xc] sm:$0xf]
        %v353 = vld [vmem:[#allocation7 + $0x10] sm:$0xf]
        %v354 = vld [vmem:[#allocation7 + $0x14] sm:$0xf]
        %v355 = vld [vmem:[#allocation7 + $0x18] sm:$0xf]
        %v356 = vld [vmem:[#allocation7 + $0x1c] sm:$0xf]
        %v357 = vld [vmem:[#allocation7 + $0x20] sm:$0xf]
        %v358 = vld [vmem:[#allocation7 + $0x24] sm:$0xf]
        %v359 = vld [vmem:[#allocation7 + $0x28] sm:$0xf]
        %v360 = vld [vmem:[#allocation7 + $0x2c] sm:$0xf]
        %v361 = vld [vmem:[#allocation7 + $0x30] sm:$0xf]
        %v362 = vld [vmem:[#allocation7 + $0x34] sm:$0xf]
        %v363 = vld [vmem:[#allocation7 + $0x38] sm:$0xf]
        %v364 = vld [vmem:[#allocation7 + $0x3c] sm:$0xf]
        %v365 = vld [vmem:[%s3] sm:$0x1]
        %v367 = vlaneseq
        %v368 = vshrl.u32 %v367, 7
        %v369 = vsub.s32 0, %v368
        %v370 = vrot.slane %v365, %v369
        %v388 = vunpack.c.l.b16 %v349
        %v389 = vunpack.c.l.b16 %v350
        %v390 = vunpack.c.l.b16 %v351
        %v391 = vunpack.c.l.b16 %v352
        %v392 = vunpack.c.l.b16 %v353
        %v393 = vunpack.c.l.b16 %v354
        %v394 = vunpack.c.l.b16 %v355
        %v395 = vunpack.c.l.b16 %v356
        %v396 = vunpack.c.l.b16 %v357
        %v397 = vunpack.c.l.b16 %v358
        %v398 = vunpack.c.l.b16 %v359
        %v399 = vunpack.c.l.b16 %v360
        %v400 = vunpack.c.l.b16 %v361
        %v401 = vunpack.c.l.b16 %v362
        %v402 = vunpack.c.l.b16 %v363
        %v403 = vunpack.c.l.b16 %v364
        %v404 = vpack.c.b16 %v389, %v388
        %v405 = vpack.c.b16 %v391, %v390
        %v406 = vpack.c.b16 %v393, %v392
        %v407 = vpack.c.b16 %v395, %v394
        %v408 = vpack.c.b16 %v397, %v396
        %v409 = vpack.c.b16 %v399, %v398
        %v410 = vpack.c.b16 %v401, %v400
        %v411 = vpack.c.b16 %v403, %v402
        %420 = vmatprep.subr.bf16.mxu0 0
        %421 = vmatpush1.bf16.msra.mxu0 %v404
        %422 = vmatprep.subr.bf16.mxu0 0
        %423 = vmatpush1.bf16.msra.mxu0 %v405
        %424 = vmatprep.subr.bf16.mxu0 0
        %425 = vmatpush1.bf16.msra.mxu0 %v406
        %426 = vmatprep.subr.bf16.mxu0 0
        %427 = vmatpush1.bf16.msra.mxu0 %v407
        %428 = vmatprep.subr.bf16.mxu0 0
        %429 = vmatpush1.bf16.msra.mxu0 %v408
        %430 = vmatprep.subr.bf16.mxu0 0
        %431 = vmatpush1.bf16.msra.mxu0 %v409
        %432 = vmatprep.subr.bf16.mxu0 0
        %433 = vmatpush1.bf16.msra.mxu0 %v410
        %434 = vmatprep.subr.bf16.mxu0 0
        %435 = vmatpush1.bf16.msra.mxu0 %v411
        %436 = vmatprep.subr.bf16.mxu0 0
        %437 = vmatpush1.bf16.msra.mxu0 0
        %438 = vmatprep.subr.bf16.mxu0 0
        %439 = vmatpush1.bf16.msra.mxu0 0
        %440 = vmatprep.subr.bf16.mxu0 0
        %441 = vmatpush1.bf16.msra.mxu0 0
        %442 = vmatprep.subr.bf16.mxu0 0
        %443 = vmatpush1.bf16.msra.mxu0 0
        %444 = vmatprep.subr.bf16.mxu0 0
        %445 = vmatpush1.bf16.msra.mxu0 0
        %446 = vmatprep.subr.bf16.mxu0 0
        %447 = vmatpush1.bf16.msra.mxu0 0
        %448 = vmatprep.subr.bf16.mxu0 0
        %449 = vmatpush1.bf16.msra.mxu0 0
        %450 = vmatprep.subr.bf16.mxu0 0
        %451 = vmatpush1.bf16.msra.mxu0 0
        %452 = vmatprep.mubr.bf16.mxu0 0
        %453 = vmatmul.mubr.bf16.gmra.mrb[0].mxu0 %v348
        %v454 = vpop.f32.mrb[0].mxu0
        %v455 = vadd.f32 %v370, %v454
        %v456 = vpop.f32.mrb[0].mxu0
        %v457 = vpop.f32.mrb[0].mxu0
        %v458 = vadd.f32 %v370, %v457
        %v459 = vpop.f32.mrb[0].mxu0
        %460 = vdwg.mxu0
        %v461 = vmax.f32 %v455, 0.0
        %v462 = vmax.f32 %v458, 0.0
        %463 = vst [vmem:[%s269] sm:$0xff] %v461
        %464 = vst [vmem:[%s269 + $0x8] sm:$0xff] %v462
        %s465 = sand.u32 %s126, 1
        %s466 = scalar_lea.sflag [#allocation4], %s465
        %s467 = sand.u32 %s126, 1
        %s468 = smul.addr %s467, 16
        %s469 = scalar_lea.vmem [#allocation8], %s468
        // Predicated region
        $region49: #{tpu_custom_call.1} parent=35 // pred_check
          %p470 = pneg %p136
        $region50: #{tpu_custom_call.1} parent=35 // pred_check_branch
          %472 = sbr.rel (%p470) target = $region52
        $region51: #{tpu_custom_call.1} parent=35 // pred_region
          %s473 = smul.u32 2, %s24
          %s475 = ssub.s32 256, 256
          %476 = vsyncadd %s466, %s475
          %s477 = smul.addr %s473, 128
          %s478 = scalar_lea.hbm %s4, %s477
          %s479 = sshll.u32 %s469, 4
          %s480 = int_to_ptr.vmem [resolvable:$true] %s479
          %485 = dma.vmem_to_hbm [thread:$0]  %s480, 256, %s478, %s466, 128, 128, 8
        $region52: #{tpu_custom_call.1} parent=35 // pred_fallthru
          _
      $region36: #{tpu_custom_call.1} parent=5 // pred_fallthru
        _
      %p486 = scmp.le.s32.totalorder 2, %s19
      // Predicated region
      $region53: #{tpu_custom_call.1} parent=5 // pred_check
        %p487 = pneg %p486
      $region54: #{tpu_custom_call.1} parent=5 // pred_check_branch
        %489 = sbr.rel (%p487) target = $region56
      $region55: #{tpu_custom_call.1} parent=5 // pred_region
        %s490 = ssub.s32 %s19, 2
        // Predicated region
        $region57: #{tpu_custom_call.1} parent=55 // pred_check
          %p491 = pneg %p142
        $region58: #{tpu_custom_call.1} parent=55 // pred_check_branch
          %493 = sbr.rel (%p491) target = $region60
        $region59: #{tpu_custom_call.1} parent=55 // pred_region
          %s494 = sand.u32 %s127, 1
          %s495 = scalar_lea.sflag [#allocation4], %s494
          %s496 = sand.u32 %s127, 1
          %s497 = smul.addr %s496, 16
          %s498 = scalar_lea.vmem [#allocation8], %s497
          %499 = dma.done %s495, 256
        $region60: #{tpu_custom_call.1} parent=55 // pred_fallthru
          _
      $region56: #{tpu_custom_call.1} parent=5 // pred_fallthru
        _
    $region6: #{tpu_custom_call.1} parent=1 // loop_footer
      %s23 = sadd.s32 1, %s19
    $region7: #{tpu_custom_call.1} parent=1 // loop_footer_branch
      %18 = sbr.rel target = $region3
    $region8: #{tpu_custom_call.1} parent=1 // loop_exit
      _
    %500 = vsyncpa [#allocation3], 1
    %s501 = scalar_lea.sflag [#allocation3], 1
    %502 = vsyncpa %s501, 1
    %503 = vsyncpa [#allocation6], 1
    %s504 = scalar_lea.sflag [#allocation6], 1
    %505 = vsyncpa %s504, 1
    %506 = vsyncpa [#allocation4], 1
    %s507 = scalar_lea.sflag [#allocation4], 1
    %508 = vsyncpa %s507, 1

</llo_original>
